<compile_context>
chip_gen: v6e
topology: v6e:2x2x1
jax: 0.10.0
libtpu: 0.0.40
codegen_flags: <defaults>
</compile_context>

<pallas_src>
import jax
import jax.numpy as jnp
import numpy as np
from jax.experimental import pallas as pl
from jax.experimental.pallas import tpu as pltpu  # noqa: F401  (TPU backend)

# ---------------- problem sizes (small, consistent with the module) ---------
B = 2           # batch
CIN = 4         # input image channels
H = W = 16      # spatial
HW = H * W
INPUT_DIM = 128                 # resnet feature dim fed to the head
HIDDEN = int(INPUT_DIM * 0.5)   # 64
OUTPUT_DIM = 10
OUT_PAD = 128                   # lane-dense padded output width (sliced to 10 outside)


# ---------------- Pallas kernel --------------------------------------------
def dam_kernel(x_ref, wct_ref, bcc_ref, w1s_ref, b1_ref, w2p_ref, b2p_ref, out_ref):
    """Whole batch in one invocation; everything is VMEM-resident.

    x_ref   : (B, CIN, HW)        images (free reshape of NCHW; lane dim = HW)
    wct_ref : (INPUT_DIM, CIN)    stand-in 1x1 conv weight, pre-transposed
    bcc_ref : (INPUT_DIM, 1)      its bias, as a column
    w1s_ref : (INPUT_DIM, HIDDEN) head Linear-1 weight, pre-scaled by 1/HW
    b1_ref  : (1, HIDDEN)
    w2p_ref : (HIDDEN, OUT_PAD)   head Linear-2 weight, zero-padded to 128 lanes
    b2p_ref : (1, OUT_PAD)
    out_ref : (B, OUT_PAD)
    """
    batch, _, hw = x_ref.shape
    wct = wct_ref[...]                       # (INPUT_DIM, CIN)
    bcc = bcc_ref[...]                       # (INPUT_DIM, 1)

    # Stand-in backbone: per-image 1x1 conv + ReLU, kept lane-dense (lane = HW).
    relu_blocks = []
    for bi in range(batch):                  # static unroll (batch == 2)
        xb = x_ref[bi]                       # (CIN, HW)
        hb = jnp.dot(wct, xb, preferred_element_type=jnp.float32) + bcc
        relu_blocks.append(jnp.maximum(hb, 0.0))          # (INPUT_DIM, HW)
    relu_all = jnp.concatenate(relu_blocks, axis=1)       # (INPUT_DIM, B*HW)

    # Global average pool as ONE MXU matmul: block-of-ones matrix contracted
    # against the lane axis; the 1/HW scale is folded into w1s on the host.
    row = jax.lax.broadcasted_iota(jnp.int32, (batch, batch * hw), 0)
    col = jax.lax.broadcasted_iota(jnp.int32, (batch, batch * hw), 1)
    in_block = (col >= row * hw) & (col < (row + 1) * hw)
    pool = jnp.where(in_block, 1.0, 0.0).astype(jnp.float32)   # (B, B*HW)
    feats_sum = jax.lax.dot_general(                            # (B, INPUT_DIM)
        pool, relu_all, (((1,), (1,)), ((), ())),
        preferred_element_type=jnp.float32)

    # DAM head, batched over B: Linear -> Sigmoid -> Linear -> Sigmoid.
    h1 = jax.nn.sigmoid(
        jnp.dot(feats_sum, w1s_ref[...], preferred_element_type=jnp.float32)
        + b1_ref[...])                                          # (B, HIDDEN)
    out = jax.nn.sigmoid(
        jnp.dot(h1, w2p_ref[...], preferred_element_type=jnp.float32)
        + b2p_ref[...])                                         # (B, OUT_PAD)

    out_ref[...] = out.astype(out_ref.dtype)                    # single lane-dense store


# ---------------- wrapper ----------------------------------------------------
def prepare_kernel_params(params):
    """One-time host-side re-layout of the weights into the kernel layout."""
    wc, bc, w1, b1, w2, b2 = params
    wct = jnp.transpose(wc)                                     # (INPUT_DIM, CIN)
    bcc = jnp.reshape(bc, (INPUT_DIM, 1))                       # (INPUT_DIM, 1)
    w1s = w1 * (1.0 / HW)                                       # fold avg-pool 1/HW
    w2p = jnp.zeros((HIDDEN, OUT_PAD), jnp.float32).at[:, :OUTPUT_DIM].set(w2)
    b2p = jnp.zeros((1, OUT_PAD), jnp.float32).at[:, :OUTPUT_DIM].set(b2)
    return (wct, bcc, w1s, b1, w2p, b2p)


@jax.jit
def dam_sequential_forward(x_nchw, kparams):
    """x_nchw: [B, CIN, H, W] float32 -> [B, OUTPUT_DIM] float32."""
    wct, bcc, w1s, b1, w2p, b2p = kparams
    b, c, h, w = x_nchw.shape
    x3d = jnp.reshape(x_nchw, (b, c, h * w))    # free reshape of NCHW (no transpose)

    out_pad = pl.pallas_call(
        dam_kernel,
        out_shape=jax.ShapeDtypeStruct((b, OUT_PAD), jnp.float32),
    )(x3d, wct, bcc, w1s, b1, w2p, b2p)
    return out_pad[:, :OUTPUT_DIM]


# ---------------- deterministic parameter init ------------------------------
def init_params(key):
    ks = jax.random.split(key, 6)

    def lin(kw, kb, fan_in, fan_out):
        # mimic torch.nn.Linear default init: U(-1/sqrt(fan_in), 1/sqrt(fan_in))
        bound = 1.0 / np.sqrt(fan_in)
        w = jax.random.uniform(kw, (fan_in, fan_out), jnp.float32, -bound, bound)
        bias = jax.random.uniform(kb, (1, fan_out), jnp.float32, -bound, bound)
        return w, bias

    wc, bc = lin(ks[0], ks[1], CIN, INPUT_DIM)        # stand-in backbone 1x1 conv
    w1, b1 = lin(ks[2], ks[3], INPUT_DIM, HIDDEN)     # head Linear 1
    w2, b2 = lin(ks[4], ks[5], HIDDEN, OUTPUT_DIM)    # head Linear 2
    return (wc, bc, w1, b1, w2, b2)


# ---------------- pure-JAX reference (for correctness check) ----------------
def reference_forward(x_nchw, params):
    wc, bc, w1, b1, w2, b2 = params
    b, c, h, w = x_nchw.shape
    px = jnp.transpose(x_nchw, (0, 2, 3, 1)).reshape(b, h * w, c)
    hh = jnp.maximum(jnp.einsum("bpc,cf->bpf", px, wc) + bc[None], 0.0)
    feats = jnp.mean(hh, axis=1)                               # (B, INPUT_DIM)
    h1 = jax.nn.sigmoid(feats @ w1 + b1)
    return jax.nn.sigmoid(h1 @ w2 + b2)


if __name__ == "__main__":
    key = jax.random.PRNGKey(0)
    kx, kp = jax.random.split(key)
    x = jax.random.normal(kx, (B, CIN, H, W), jnp.float32)
    params = init_params(kp)
    kparams = prepare_kernel_params(params)   # one-time weight re-layout

    out = dam_sequential_forward(x, kparams)
    jax.block_until_ready(out)

    ref = reference_forward(x, params)
    assert out.shape == (B, OUTPUT_DIM)
    np.testing.assert_allclose(np.asarray(out), np.asarray(ref), rtol=1e-5, atol=1e-5)

    print("KERNEL_OK")
</pallas_src>

<mosaic_0001>
module attributes {stable_mosaic.version = 11 : i64} {
  func.func @dam_kernel(%arg0: memref<2x4x256xf32, #tpu.memory_space<vmem>>, %arg1: memref<128x4xf32, #tpu.memory_space<vmem>>, %arg2: memref<128x1xf32, #tpu.memory_space<vmem>>, %arg3: memref<128x64xf32, #tpu.memory_space<vmem>>, %arg4: memref<1x64xf32, #tpu.memory_space<vmem>>, %arg5: memref<64x128xf32, #tpu.memory_space<vmem>>, %arg6: memref<1x128xf32, #tpu.memory_space<vmem>>, %arg7: memref<2x128xf32, #tpu.memory_space<vmem>>) attributes {dimension_semantics = [], scalar_prefetch = 0 : i64, scratch_operands = 0 : i64, tpu.core_type = #tpu.core_type<tc>} {
    %c0 = arith.constant 0 : index
    %c0_0 = arith.constant 0 : index
    %0 = vector.load %arg1[%c0, %c0_0] : memref<128x4xf32, #tpu.memory_space<vmem>>, vector<128x4xf32>
    %c0_1 = arith.constant 0 : index
    %c0_2 = arith.constant 0 : index
    %1 = vector.load %arg2[%c0_1, %c0_2] : memref<128x1xf32, #tpu.memory_space<vmem>>, vector<128x1xf32>
    %c0_3 = arith.constant 0 : index
    %c0_4 = arith.constant 0 : index
    %c0_5 = arith.constant 0 : index
    %2 = vector.load %arg0[%c0_3, %c0_4, %c0_5] : memref<2x4x256xf32, #tpu.memory_space<vmem>>, vector<1x4x256xf32>
    %3 = vector.shape_cast %2 : vector<1x4x256xf32> to vector<4x256xf32>
    %cst = arith.constant dense<0.000000e+00> : vector<128x256xf32>
    %4 = tpu.matmul %0, %3, %cst {dimension_numbers = #tpu.dot_dimension_numbers<[1], [0], [0], [1], [0, 0, 1, 1], [], []>} : vector<128x4xf32>, vector<4x256xf32>, vector<128x256xf32> -> vector<128x256xf32>
    %5 = vector.broadcast %1 : vector<128x1xf32> to vector<128x256xf32>
    %6 = arith.addf %4, %5 : vector<128x256xf32>
    %cst_6 = arith.constant 0.000000e+00 : f32
    %7 = vector.broadcast %cst_6 : f32 to vector<128x256xf32>
    %8 = arith.maximumf %6, %7 : vector<128x256xf32>
    %c1 = arith.constant 1 : index
    %c0_7 = arith.constant 0 : index
    %c0_8 = arith.constant 0 : index
    %9 = vector.load %arg0[%c1, %c0_7, %c0_8] : memref<2x4x256xf32, #tpu.memory_space<vmem>>, vector<1x4x256xf32>
    %10 = vector.shape_cast %9 : vector<1x4x256xf32> to vector<4x256xf32>
    %cst_9 = arith.constant dense<0.000000e+00> : vector<128x256xf32>
    %11 = tpu.matmul %0, %10, %cst_9 {dimension_numbers = #tpu.dot_dimension_numbers<[1], [0], [0], [1], [0, 0, 1, 1], [], []>} : vector<128x4xf32>, vector<4x256xf32>, vector<128x256xf32> -> vector<128x256xf32>
    %12 = vector.broadcast %1 : vector<128x1xf32> to vector<128x256xf32>
    %13 = arith.addf %11, %12 : vector<128x256xf32>
    %cst_10 = arith.constant 0.000000e+00 : f32
    %14 = vector.broadcast %cst_10 : f32 to vector<128x256xf32>
    %15 = arith.maximumf %13, %14 : vector<128x256xf32>
    %16 = tpu.concatenate %8, %15 in 1 : vector<128x256xf32>, vector<128x256xf32> -> vector<128x512xf32>
    %17 = tpu.iota {dimensions = array<i32: 0>} : vector<2x512xi32>
    %18 = tpu.iota {dimensions = array<i32: 1>} : vector<2x512xi32>
    %c256_i32 = arith.constant 256 : i32
    %19 = vector.broadcast %c256_i32 : i32 to vector<2x512xi32>
    %20 = arith.muli %17, %19 : vector<2x512xi32>
    %21 = arith.cmpi sge, %18, %20 : vector<2x512xi32>
    %c1_i32 = arith.constant 1 : i32
    %22 = vector.broadcast %c1_i32 : i32 to vector<2x512xi32>
    %23 = arith.addi %17, %22 : vector<2x512xi32>
    %c256_i32_11 = arith.constant 256 : i32
    %24 = vector.broadcast %c256_i32_11 : i32 to vector<2x512xi32>
    %25 = arith.muli %23, %24 : vector<2x512xi32>
    %26 = arith.cmpi slt, %18, %25 : vector<2x512xi32>
    %27 = arith.andi %21, %26 : vector<2x512xi1>
    %cst_12 = arith.constant 1.000000e+00 : f32
    %cst_13 = arith.constant 0.000000e+00 : f32
    %28 = vector.broadcast %cst_12 : f32 to vector<2x512xf32>
    %29 = vector.broadcast %cst_13 : f32 to vector<2x512xf32>
    %30 = arith.select %27, %28, %29 : vector<2x512xi1>, vector<2x512xf32>
    %cst_14 = arith.constant dense<0.000000e+00> : vector<2x128xf32>
    %31 = tpu.matmul %30, %16, %cst_14 {dimension_numbers = #tpu.dot_dimension_numbers<[1], [1], [0], [0], [0, 0, 1, 0], [], []>} : vector<2x512xf32>, vector<128x512xf32>, vector<2x128xf32> -> vector<2x128xf32>
    %c0_15 = arith.constant 0 : index
    %c0_16 = arith.constant 0 : index
    %32 = vector.load %arg3[%c0_15, %c0_16] : memref<128x64xf32, #tpu.memory_space<vmem>>, vector<128x64xf32>
    %cst_17 = arith.constant dense<0.000000e+00> : vector<2x64xf32>
    %33 = tpu.matmul %31, %32, %cst_17 {dimension_numbers = #tpu.dot_dimension_numbers<[1], [0], [0], [1], [0, 0, 1, 1], [], []>} : vector<2x128xf32>, vector<128x64xf32>, vector<2x64xf32> -> vector<2x64xf32>
    %c0_18 = arith.constant 0 : index
    %c0_19 = arith.constant 0 : index
    %34 = vector.load %arg4[%c0_18, %c0_19] : memref<1x64xf32, #tpu.memory_space<vmem>>, vector<1x64xf32>
    %35 = vector.broadcast %34 : vector<1x64xf32> to vector<2x64xf32>
    %36 = arith.addf %33, %35 : vector<2x64xf32>
    %37 = arith.negf %36 : vector<2x64xf32>
    %38 = math.exp %37 : vector<2x64xf32>
    %cst_20 = arith.constant 1.000000e+00 : f32
    %39 = vector.broadcast %cst_20 : f32 to vector<2x64xf32>
    %40 = arith.addf %39, %38 : vector<2x64xf32>
    %41 = arith.divf %39, %40 : vector<2x64xf32>
    %c0_21 = arith.constant 0 : index
    %c0_22 = arith.constant 0 : index
    %42 = vector.load %arg5[%c0_21, %c0_22] : memref<64x128xf32, #tpu.memory_space<vmem>>, vector<64x128xf32>
    %cst_23 = arith.constant dense<0.000000e+00> : vector<2x128xf32>
    %43 = tpu.matmul %41, %42, %cst_23 {dimension_numbers = #tpu.dot_dimension_numbers<[1], [0], [0], [1], [0, 0, 1, 1], [], []>} : vector<2x64xf32>, vector<64x128xf32>, vector<2x128xf32> -> vector<2x128xf32>
    %c0_24 = arith.constant 0 : index
    %c0_25 = arith.constant 0 : index
    %44 = vector.load %arg6[%c0_24, %c0_25] : memref<1x128xf32, #tpu.memory_space<vmem>>, vector<1x128xf32>
    %45 = vector.broadcast %44 : vector<1x128xf32> to vector<2x128xf32>
    %46 = arith.addf %43, %45 : vector<2x128xf32>
    %47 = arith.negf %46 : vector<2x128xf32>
    %48 = math.exp %47 : vector<2x128xf32>
    %cst_26 = arith.constant 1.000000e+00 : f32
    %49 = vector.broadcast %cst_26 : f32 to vector<2x128xf32>
    %50 = arith.addf %49, %48 : vector<2x128xf32>
    %51 = arith.divf %49, %50 : vector<2x128xf32>
    %c0_27 = arith.constant 0 : index
    %c0_28 = arith.constant 0 : index
    %52 = vector.load %arg7[%c0_27, %c0_28] : memref<2x128xf32, #tpu.memory_space<vmem>>, vector<2x128xf32>
    tpu.vector_store %arg7[%c0_27, %c0_28], %51 {strides = array<i32>} : memref<2x128xf32, #tpu.memory_space<vmem>>, vector<2x128xf32>,
    return
  }
}

</mosaic_0001>

<llo_original>
// kernel: dam_sequential_forward.1
$region0: #{dam_sequential_forward.1}
  #allocation0 [shape = 'u32[]', space=smem, size = 0x4, offset = 0x4, fixed_abs, tag = 'smem constant byte address 0x4 - core index']
  #allocation1 [shape = 'u32[144,128]{1,0:T(1,128)}', space=vmem, size = 0x12000, scoped, tag = 'internal scratch']
  %s0 = inlined_call_operand.vmem [shape: f32[2,4,256], index: 0, kind: input, shape index: {}]
  %s1 = inlined_call_operand.vmem [shape: f32[128,4], index: 1, kind: input, shape index: {}]
  %s2 = inlined_call_operand.vmem [shape: f32[128,1], index: 2, kind: input, shape index: {}]
  %s3 = inlined_call_operand.vmem [shape: f32[128,64], index: 3, kind: input, shape index: {}]
  %s4 = inlined_call_operand.vmem [shape: f32[1,64], index: 4, kind: input, shape index: {}]
  %s5 = inlined_call_operand.vmem [shape: f32[64,128], index: 5, kind: input, shape index: {}]
  %s6 = inlined_call_operand.vmem [shape: f32[1,128], index: 6, kind: input, shape index: {}]
  %s7 = inlined_call_operand.hbm [shape: f32[2,128], index: 7, kind: output, shape index: {}]
  %s8 = sld [smem:[#allocation0]]
  $region38: #{dam_sequential_forward.1} parent=0
    _
  %s10 = ssub.s32 1, %s8
  %s11 = scalar_select 0, %s10, %s8
  $region1: #{dam_sequential_forward.1} parent=0
    #allocation2 [shape = 'u8[1024]{0}', space=vmem, size = 0x400, scoped, tag = 'output window, operand 0, single buffered']
    #allocation3 [shape = 's32[1]{0}', space=sflag, size = 0x4, scoped, tag = 'scoped memory for dam_sequential_forward.1']
    %12 = vsyncpa [#allocation3], 0
    // Predicated region
    $region2: #{dam_sequential_forward.1} parent=1 // pred_check
      _
    $region3: #{dam_sequential_forward.1} parent=1 // pred_check_branch
      %14 = sbr.rel (0) target = $region5
    $region4: #{dam_sequential_forward.1} parent=1 // pred_region
      _
    $region5: #{dam_sequential_forward.1} parent=1 // pred_fallthru
      _
    // Predicated region
    $region6: #{dam_sequential_forward.1} parent=1 // pred_check
      _
    $region7: #{dam_sequential_forward.1} parent=1 // pred_check_branch
      %16 = sbr.rel (0) target = $region9
    $region8: #{dam_sequential_forward.1} parent=1 // pred_region
      _
    $region9: #{dam_sequential_forward.1} parent=1 // pred_fallthru
      _
    // Predicated region
    $region10: #{dam_sequential_forward.1} parent=1 // pred_check
      _
    $region11: #{dam_sequential_forward.1} parent=1 // pred_check_branch
      %18 = sbr.rel (0) target = $region13
    $region12: #{dam_sequential_forward.1} parent=1 // pred_region
      _
    $region13: #{dam_sequential_forward.1} parent=1 // pred_fallthru
      _
    // Predicated region
    $region14: #{dam_sequential_forward.1} parent=1 // pred_check
      _
    $region15: #{dam_sequential_forward.1} parent=1 // pred_check_branch
      %20 = sbr.rel (0) target = $region17
    $region16: #{dam_sequential_forward.1} parent=1 // pred_region
      _
    $region17: #{dam_sequential_forward.1} parent=1 // pred_fallthru
      _
    // Predicated region
    $region18: #{dam_sequential_forward.1} parent=1 // pred_check
      _
    $region19: #{dam_sequential_forward.1} parent=1 // pred_check_branch
      %22 = sbr.rel (0) target = $region21
    $region20: #{dam_sequential_forward.1} parent=1 // pred_region
      _
    $region21: #{dam_sequential_forward.1} parent=1 // pred_fallthru
      _
    // Predicated region
    $region22: #{dam_sequential_forward.1} parent=1 // pred_check
      _
    $region23: #{dam_sequential_forward.1} parent=1 // pred_check_branch
      %24 = sbr.rel (0) target = $region25
    $region24: #{dam_sequential_forward.1} parent=1 // pred_region
      _
    $region25: #{dam_sequential_forward.1} parent=1 // pred_fallthru
      _
    // Predicated region
    $region26: #{dam_sequential_forward.1} parent=1 // pred_check
      _
    $region27: #{dam_sequential_forward.1} parent=1 // pred_check_branch
      %26 = sbr.rel (0) target = $region29
    $region28: #{dam_sequential_forward.1} parent=1 // pred_region
      _
    $region29: #{dam_sequential_forward.1} parent=1 // pred_fallthru
      _
    %v27 = vld [vmem:[%s1] sm:$0xff]
    %v28 = vld [vmem:[%s1 + $0x8] sm:$0xff]
    %v29 = vld [vmem:[%s1 + $0x10] sm:$0xff]
    %v30 = vld [vmem:[%s1 + $0x18] sm:$0xff]
    %v31 = vld [vmem:[%s1 + $0x20] sm:$0xff]
    %v32 = vld [vmem:[%s1 + $0x28] sm:$0xff]
    %v33 = vld [vmem:[%s1 + $0x30] sm:$0xff]
    %v34 = vld [vmem:[%s1 + $0x38] sm:$0xff]
    %v35 = vld [vmem:[%s1 + $0x40] sm:$0xff]
    %v36 = vld [vmem:[%s1 + $0x48] sm:$0xff]
    %v37 = vld [vmem:[%s1 + $0x50] sm:$0xff]
    %v38 = vld [vmem:[%s1 + $0x58] sm:$0xff]
    %v39 = vld [vmem:[%s1 + $0x60] sm:$0xff]
    %v40 = vld [vmem:[%s1 + $0x68] sm:$0xff]
    %v41 = vld [vmem:[%s1 + $0x70] sm:$0xff]
    %v42 = vld [vmem:[%s1 + $0x78] sm:$0xff]
    %v43 = vld [vmem:[%s2] sm:$0xff]
    %v44 = vld [vmem:[%s2 + $0x8] sm:$0xff]
    %v45 = vld [vmem:[%s2 + $0x10] sm:$0xff]
    %v46 = vld [vmem:[%s2 + $0x18] sm:$0xff]
    %v47 = vld [vmem:[%s2 + $0x20] sm:$0xff]
    %v48 = vld [vmem:[%s2 + $0x28] sm:$0xff]
    %v49 = vld [vmem:[%s2 + $0x30] sm:$0xff]
    %v50 = vld [vmem:[%s2 + $0x38] sm:$0xff]
    %v51 = vld [vmem:[%s2 + $0x40] sm:$0xff]
    %v52 = vld [vmem:[%s2 + $0x48] sm:$0xff]
    %v53 = vld [vmem:[%s2 + $0x50] sm:$0xff]
    %v54 = vld [vmem:[%s2 + $0x58] sm:$0xff]
    %v55 = vld [vmem:[%s2 + $0x60] sm:$0xff]
    %v56 = vld [vmem:[%s2 + $0x68] sm:$0xff]
    %v57 = vld [vmem:[%s2 + $0x70] sm:$0xff]
    %v58 = vld [vmem:[%s2 + $0x78] sm:$0xff]
    %v59 = vld [vmem:[%s0] sm:$0xff]
    %61 = vset.pattern.permute.xlu0 0
    %62 = vperm.xlu0 %61, %v43
    %v63 = vpop.permute.xlu0 %62
    %66 = vset.pattern.permute.xlu0 0
    %67 = vperm.xlu0 %66, %v44
    %v68 = vpop.permute.xlu0 %67
    %71 = vset.pattern.permute.xlu0 0
    %72 = vperm.xlu0 %71, %v45
    %v73 = vpop.permute.xlu0 %72
    %76 = vset.pattern.permute.xlu0 0
    %77 = vperm.xlu0 %76, %v46
    %v78 = vpop.permute.xlu0 %77
    %81 = vset.pattern.permute.xlu0 0
    %82 = vperm.xlu0 %81, %v47
    %v83 = vpop.permute.xlu0 %82
    %86 = vset.pattern.permute.xlu0 0
    %87 = vperm.xlu0 %86, %v48
    %v88 = vpop.permute.xlu0 %87
    %91 = vset.pattern.permute.xlu0 0
    %92 = vperm.xlu0 %91, %v49
    %v93 = vpop.permute.xlu0 %92
    %96 = vset.pattern.permute.xlu0 0
    %97 = vperm.xlu0 %96, %v50
    %v98 = vpop.permute.xlu0 %97
    %101 = vset.pattern.permute.xlu0 0
    %102 = vperm.xlu0 %101, %v51
    %v103 = vpop.permute.xlu0 %102
    %106 = vset.pattern.permute.xlu0 0
    %107 = vperm.xlu0 %106, %v52
    %v108 = vpop.permute.xlu0 %107
    %111 = vset.pattern.permute.xlu0 0
    %112 = vperm.xlu0 %111, %v53
    %v113 = vpop.permute.xlu0 %112
    %116 = vset.pattern.permute.xlu0 0
    %117 = vperm.xlu0 %116, %v54
    %v118 = vpop.permute.xlu0 %117
    %121 = vset.pattern.permute.xlu0 0
    %122 = vperm.xlu0 %121, %v55
    %v123 = vpop.permute.xlu0 %122
    %126 = vset.pattern.permute.xlu0 0
    %127 = vperm.xlu0 %126, %v56
    %v128 = vpop.permute.xlu0 %127
    %131 = vset.pattern.permute.xlu0 0
    %132 = vperm.xlu0 %131, %v57
    %v133 = vpop.permute.xlu0 %132
    %136 = vset.pattern.permute.xlu0 0
    %137 = vperm.xlu0 %136, %v58
    %v138 = vpop.permute.xlu0 %137
    %v141 = vcombine.high %v59, %v59
    %vm142 = vcmask 31744
    %v144 = vsel %vm142, %v27, 0
    %v147 = vsel %vm142, %v28, 0
    %v150 = vsel %vm142, %v29, 0
    %v153 = vsel %vm142, %v30, 0
    %v156 = vsel %vm142, %v31, 0
    %v159 = vsel %vm142, %v32, 0
    %v162 = vsel %vm142, %v33, 0
    %v165 = vsel %vm142, %v34, 0
    %v168 = vsel %vm142, %v35, 0
    %v171 = vsel %vm142, %v36, 0
    %v174 = vsel %vm142, %v37, 0
    %v177 = vsel %vm142, %v38, 0
    %v180 = vsel %vm142, %v39, 0
    %v183 = vsel %vm142, %v40, 0
    %v186 = vsel %vm142, %v41, 0
    %v189 = vsel %vm142, %v42, 0
    %vm191 = vcmask 1043456
    %v192 = vsel %vm191, %v59, 0
    %v194 = vsel %vm191, %v141, 0
    %196 = vmatprep.subr.mxu0 0.0
    %197 = vmatpush1.msra.mxu0 0.0
    %198 = vmatprep.subr.mxu0 0.0
    %199 = vmatpush1.msra.mxu0 0.0
    %200 = vmatprep.subr.mxu0 0.0
    %201 = vmatpush1.msra.mxu0 0.0
    %202 = vmatprep.subr.mxu0 0.0
    %203 = vmatpush1.msra.mxu0 0.0
    %204 = vmatprep.subr.mxu0 0.0
    %205 = vmatpush1.msra.mxu0 0.0
    %206 = vmatprep.subr.mxu0 0.0
    %207 = vmatpush1.msra.mxu0 0.0
    %208 = vmatprep.subr.mxu0 0.0
    %209 = vmatpush1.msra.mxu0 0.0
    %210 = vmatprep.subr.mxu0 0.0
    %211 = vmatpush1.msra.mxu0 0.0
    %212 = vmatprep.subr.mxu0 0.0
    %213 = vmatpush1.msra.mxu0 0.0
    %214 = vmatprep.subr.mxu0 0.0
    %215 = vmatpush1.msra.mxu0 0.0
    %216 = vmatprep.subr.mxu0 0.0
    %217 = vmatpush1.msra.mxu0 0.0
    %218 = vmatprep.subr.mxu0 0.0
    %219 = vmatpush1.msra.mxu0 0.0
    %220 = vmatprep.subr.mxu0 0.0
    %221 = vmatpush1.msra.mxu0 0.0
    %222 = vmatprep.subr.mxu0 0.0
    %223 = vmatpush1.msra.mxu0 0.0
    %224 = vmatprep.subr.mxu0 0.0
    %225 = vmatpush1.msra.mxu0 0.0
    %226 = vmatprep.subr.mxu0 %v194
    %227 = vmatpush1.msra.mxu0 %v192
    %228 = vmatprep.subr.mxu0 0.0
    %229 = vmatpush2.msra.mxu0 0.0
    %230 = vmatprep.subr.mxu0 0.0
    %231 = vmatpush2.msra.mxu0 0.0
    %232 = vmatprep.subr.mxu0 0.0
    %233 = vmatpush2.msra.mxu0 0.0
    %234 = vmatprep.subr.mxu0 0.0
    %235 = vmatpush2.msra.mxu0 0.0
    %236 = vmatprep.subr.mxu0 0.0
    %237 = vmatpush2.msra.mxu0 0.0
    %238 = vmatprep.subr.mxu0 0.0
    %239 = vmatpush2.msra.mxu0 0.0
    %240 = vmatprep.subr.mxu0 0.0
    %241 = vmatpush2.msra.mxu0 0.0
    %242 = vmatprep.subr.mxu0 0.0
    %243 = vmatpush2.msra.mxu0 0.0
    %244 = vmatprep.subr.mxu0 0.0
    %245 = vmatpush2.msra.mxu0 0.0
    %246 = vmatprep.subr.mxu0 0.0
    %247 = vmatpush2.msra.mxu0 0.0
    %248 = vmatprep.subr.mxu0 0.0
    %249 = vmatpush2.msra.mxu0 0.0
    %250 = vmatprep.subr.mxu0 0.0
    %251 = vmatpush2.msra.mxu0 0.0
    %252 = vmatprep.subr.mxu0 0.0
    %253 = vmatpush2.msra.mxu0 0.0
    %254 = vmatprep.subr.mxu0 0.0
    %255 = vmatpush2.msra.mxu0 0.0
    %256 = vmatprep.subr.mxu0 0.0
    %257 = vmatpush2.msra.mxu0 0.0
    %258 = vmatprep.subr.mxu0 0.0
    %259 = vmatpush2.msra.mxu0 0.0
    %260 = vmatprep.mubr.f32.mxu0 0.0
    %261 = vmatmul.mubr.f32.gmra.mxu0 %v144
    %v262 = vpop.f32.mrf.mxu0
    %v263 = vadd.f32 %v63, %v262
    %v264 = vpop.f32.mrf.mxu0
    %v265 = vadd.f32 %v63, %v264
    %266 = vmatprep.mubr.f32.mxu0 0.0
    %267 = vmatmul.mubr.f32.gmra.mxu0 %v147
    %v268 = vpop.f32.mrf.mxu0
    %v269 = vadd.f32 %v68, %v268
    %v270 = vpop.f32.mrf.mxu0
    %v271 = vadd.f32 %v68, %v270
    %272 = vmatprep.mubr.f32.mxu0 0.0
    %273 = vmatmul.mubr.f32.gmra.mxu0 %v150
    %v274 = vpop.f32.mrf.mxu0
    %v275 = vadd.f32 %v73, %v274
    %v276 = vpop.f32.mrf.mxu0
    %v277 = vadd.f32 %v73, %v276
    %278 = vmatprep.mubr.f32.mxu0 0.0
    %279 = vmatmul.mubr.f32.gmra.mxu0 %v153
    %v280 = vpop.f32.mrf.mxu0
    %v281 = vadd.f32 %v78, %v280
    %v282 = vpop.f32.mrf.mxu0
    %v283 = vadd.f32 %v78, %v282
    %284 = vmatprep.mubr.f32.mxu0 0.0
    %285 = vmatmul.mubr.f32.gmra.mxu0 %v156
    %v286 = vpop.f32.mrf.mxu0
    %v287 = vadd.f32 %v83, %v286
    %v288 = vpop.f32.mrf.mxu0
    %v289 = vadd.f32 %v83, %v288
    %290 = vmatprep.mubr.f32.mxu0 0.0
    %291 = vmatmul.mubr.f32.gmra.mxu0 %v159
    %v292 = vpop.f32.mrf.mxu0
    %v293 = vadd.f32 %v88, %v292
    %v294 = vpop.f32.mrf.mxu0
    %v295 = vadd.f32 %v88, %v294
    %296 = vmatprep.mubr.f32.mxu0 0.0
    %297 = vmatmul.mubr.f32.gmra.mxu0 %v162
    %v298 = vpop.f32.mrf.mxu0
    %v299 = vadd.f32 %v93, %v298
    %v300 = vpop.f32.mrf.mxu0
    %v301 = vadd.f32 %v93, %v300
    %302 = vmatprep.mubr.f32.mxu0 0.0
    %303 = vmatmul.mubr.f32.gmra.mxu0 %v165
    %v304 = vpop.f32.mrf.mxu0
    %v305 = vadd.f32 %v98, %v304
    %v306 = vpop.f32.mrf.mxu0
    %v307 = vadd.f32 %v98, %v306
    %308 = vmatprep.mubr.f32.mxu0 0.0
    %309 = vmatmul.mubr.f32.gmra.mxu0 %v168
    %v310 = vpop.f32.mrf.mxu0
    %v311 = vadd.f32 %v103, %v310
    %v312 = vpop.f32.mrf.mxu0
    %v313 = vadd.f32 %v103, %v312
    %314 = vmatprep.mubr.f32.mxu0 0.0
    %315 = vmatmul.mubr.f32.gmra.mxu0 %v171
    %v316 = vpop.f32.mrf.mxu0
    %v317 = vadd.f32 %v108, %v316
    %v318 = vpop.f32.mrf.mxu0
    %v319 = vadd.f32 %v108, %v318
    %320 = vmatprep.mubr.f32.mxu0 0.0
    %321 = vmatmul.mubr.f32.gmra.mxu0 %v174
    %v322 = vpop.f32.mrf.mxu0
    %v323 = vadd.f32 %v113, %v322
    %v324 = vpop.f32.mrf.mxu0
    %v325 = vadd.f32 %v113, %v324
    %326 = vmatprep.mubr.f32.mxu0 0.0
    %327 = vmatmul.mubr.f32.gmra.mxu0 %v177
    %v328 = vpop.f32.mrf.mxu0
    %v329 = vadd.f32 %v118, %v328
    %v330 = vpop.f32.mrf.mxu0
    %v331 = vadd.f32 %v118, %v330
    %332 = vmatprep.mubr.f32.mxu0 0.0
    %333 = vmatmul.mubr.f32.gmra.mxu0 %v180
    %v334 = vpop.f32.mrf.mxu0
    %v335 = vadd.f32 %v123, %v334
    %v336 = vpop.f32.mrf.mxu0
    %v337 = vadd.f32 %v123, %v336
    %338 = vmatprep.mubr.f32.mxu0 0.0
    %339 = vmatmul.mubr.f32.gmra.mxu0 %v183
    %v340 = vpop.f32.mrf.mxu0
    %v341 = vadd.f32 %v128, %v340
    %v342 = vpop.f32.mrf.mxu0
    %v343 = vadd.f32 %v128, %v342
    %344 = vmatprep.mubr.f32.mxu0 0.0
    %345 = vmatmul.mubr.f32.gmra.mxu0 %v186
    %v346 = vpop.f32.mrf.mxu0
    %v347 = vadd.f32 %v133, %v346
    %v348 = vpop.f32.mrf.mxu0
    %v349 = vadd.f32 %v133, %v348
    %350 = vmatprep.mubr.f32.mxu0 0.0
    %351 = vmatmul.mubr.f32.gmra.mxu0 %v189
    %v352 = vpop.f32.mrf.mxu0
    %v353 = vadd.f32 %v138, %v352
    %v354 = vpop.f32.mrf.mxu0
    %v355 = vadd.f32 %v138, %v354
    %356 = vdwg.mxu0
    %v357 = vmax.f32 %v263, 0.0
    %v358 = vmax.f32 %v265, 0.0
    %v359 = vmax.f32 %v269, 0.0
    %v360 = vmax.f32 %v271, 0.0
    %v361 = vmax.f32 %v275, 0.0
    %v362 = vmax.f32 %v277, 0.0
    %v363 = vmax.f32 %v281, 0.0
    %v364 = vmax.f32 %v283, 0.0
    %v365 = vmax.f32 %v287, 0.0
    %v366 = vmax.f32 %v289, 0.0
    %v367 = vmax.f32 %v293, 0.0
    %v368 = vmax.f32 %v295, 0.0
    %v369 = vmax.f32 %v299, 0.0
    %v370 = vmax.f32 %v301, 0.0
    %v371 = vmax.f32 %v305, 0.0
    %v372 = vmax.f32 %v307, 0.0
    %v373 = vmax.f32 %v311, 0.0
    %v374 = vmax.f32 %v313, 0.0
    %v375 = vmax.f32 %v317, 0.0
    %v376 = vmax.f32 %v319, 0.0
    %v377 = vmax.f32 %v323, 0.0
    %v378 = vmax.f32 %v325, 0.0
    %v379 = vmax.f32 %v329, 0.0
    %v380 = vmax.f32 %v331, 0.0
    %v381 = vmax.f32 %v335, 0.0
    %v382 = vmax.f32 %v337, 0.0
    %v383 = vmax.f32 %v341, 0.0
    %v384 = vmax.f32 %v343, 0.0
    %v385 = vmax.f32 %v347, 0.0
    %v386 = vmax.f32 %v349, 0.0
    %v387 = vmax.f32 %v353, 0.0
    %v388 = vmax.f32 %v355, 0.0
    %s389 = scalar_lea.vmem %s0, 8
    %v390 = vld [vmem:[%s389] sm:$0xff]
    %v392 = vcombine.high %v390, %v390
    %v393 = vsel %vm191, %v390, 0
    %v395 = vsel %vm191, %v392, 0
    %397 = vmatprep.subr.mxu0 0.0
    %398 = vmatpush1.msra.mxu0 0.0
    %399 = vmatprep.subr.mxu0 0.0
    %400 = vmatpush1.msra.mxu0 0.0
    %401 = vmatprep.subr.mxu0 0.0
    %402 = vmatpush1.msra.mxu0 0.0
    %403 = vmatprep.subr.mxu0 0.0
    %404 = vmatpush1.msra.mxu0 0.0
    %405 = vmatprep.subr.mxu0 0.0
    %406 = vmatpush1.msra.mxu0 0.0
    %407 = vmatprep.subr.mxu0 0.0
    %408 = vmatpush1.msra.mxu0 0.0
    %409 = vmatprep.subr.mxu0 0.0
    %410 = vmatpush1.msra.mxu0 0.0
    %411 = vmatprep.subr.mxu0 0.0
    %412 = vmatpush1.msra.mxu0 0.0
    %413 = vmatprep.subr.mxu0 0.0
    %414 = vmatpush1.msra.mxu0 0.0
    %415 = vmatprep.subr.mxu0 0.0
    %416 = vmatpush1.msra.mxu0 0.0
    %417 = vmatprep.subr.mxu0 0.0
    %418 = vmatpush1.msra.mxu0 0.0
    %419 = vmatprep.subr.mxu0 0.0
    %420 = vmatpush1.msra.mxu0 0.0
    %421 = vmatprep.subr.mxu0 0.0
    %422 = vmatpush1.msra.mxu0 0.0
    %423 = vmatprep.subr.mxu0 0.0
    %424 = vmatpush1.msra.mxu0 0.0
    %425 = vmatprep.subr.mxu0 0.0
    %426 = vmatpush1.msra.mxu0 0.0
    %427 = vmatprep.subr.mxu0 %v395
    %428 = vmatpush1.msra.mxu0 %v393
    %429 = vmatprep.subr.mxu0 0.0
    %430 = vmatpush2.msra.mxu0 0.0
    %431 = vmatprep.subr.mxu0 0.0
    %432 = vmatpush2.msra.mxu0 0.0
    %433 = vmatprep.subr.mxu0 0.0
    %434 = vmatpush2.msra.mxu0 0.0
    %435 = vmatprep.subr.mxu0 0.0
    %436 = vmatpush2.msra.mxu0 0.0
    %437 = vmatprep.subr.mxu0 0.0
    %438 = vmatpush2.msra.mxu0 0.0
    %439 = vmatprep.subr.mxu0 0.0
    %440 = vmatpush2.msra.mxu0 0.0
    %441 = vmatprep.subr.mxu0 0.0
    %442 = vmatpush2.msra.mxu0 0.0
    %443 = vmatprep.subr.mxu0 0.0
    %444 = vmatpush2.msra.mxu0 0.0
    %445 = vmatprep.subr.mxu0 0.0
    %446 = vmatpush2.msra.mxu0 0.0
    %447 = vmatprep.subr.mxu0 0.0
    %448 = vmatpush2.msra.mxu0 0.0
    %449 = vmatprep.subr.mxu0 0.0
    %450 = vmatpush2.msra.mxu0 0.0
    %451 = vmatprep.subr.mxu0 0.0
    %452 = vmatpush2.msra.mxu0 0.0
    %453 = vmatprep.subr.mxu0 0.0
    %454 = vmatpush2.msra.mxu0 0.0
    %455 = vmatprep.subr.mxu0 0.0
    %456 = vmatpush2.msra.mxu0 0.0
    %457 = vmatprep.subr.mxu0 0.0
    %458 = vmatpush2.msra.mxu0 0.0
    %459 = vmatprep.subr.mxu0 0.0
    %460 = vmatpush2.msra.mxu0 0.0
    %461 = vmatprep.mubr.f32.mxu0 0.0
    %462 = vmatmul.mubr.f32.gmra.mxu0 %v144
    %v463 = vpop.f32.mrf.mxu0
    %v464 = vadd.f32 %v63, %v463
    %v465 = vpop.f32.mrf.mxu0
    %v466 = vadd.f32 %v63, %v465
    %467 = vmatprep.mubr.f32.mxu0 0.0
    %468 = vmatmul.mubr.f32.gmra.mxu0 %v147
    %v469 = vpop.f32.mrf.mxu0
    %v470 = vadd.f32 %v68, %v469
    %v471 = vpop.f32.mrf.mxu0
    %v472 = vadd.f32 %v68, %v471
    %473 = vmatprep.mubr.f32.mxu0 0.0
    %474 = vmatmul.mubr.f32.gmra.mxu0 %v150
    %v475 = vpop.f32.mrf.mxu0
    %v476 = vadd.f32 %v73, %v475
    %v477 = vpop.f32.mrf.mxu0
    %v478 = vadd.f32 %v73, %v477
    %479 = vmatprep.mubr.f32.mxu0 0.0
    %480 = vmatmul.mubr.f32.gmra.mxu0 %v153
    %v481 = vpop.f32.mrf.mxu0
    %v482 = vadd.f32 %v78, %v481
    %v483 = vpop.f32.mrf.mxu0
    %v484 = vadd.f32 %v78, %v483
    %485 = vmatprep.mubr.f32.mxu0 0.0
    %486 = vmatmul.mubr.f32.gmra.mxu0 %v156
    %v487 = vpop.f32.mrf.mxu0
    %v488 = vadd.f32 %v83, %v487
    %v489 = vpop.f32.mrf.mxu0
    %v490 = vadd.f32 %v83, %v489
    %491 = vmatprep.mubr.f32.mxu0 0.0
    %492 = vmatmul.mubr.f32.gmra.mxu0 %v159
    %v493 = vpop.f32.mrf.mxu0
    %v494 = vadd.f32 %v88, %v493
    %v495 = vpop.f32.mrf.mxu0
    %v496 = vadd.f32 %v88, %v495
    %497 = vmatprep.mubr.f32.mxu0 0.0
    %498 = vmatmul.mubr.f32.gmra.mxu0 %v162
    %v499 = vpop.f32.mrf.mxu0
    %v500 = vadd.f32 %v93, %v499
    %v501 = vpop.f32.mrf.mxu0
    %v502 = vadd.f32 %v93, %v501
    %503 = vmatprep.mubr.f32.mxu0 0.0
    %504 = vmatmul.mubr.f32.gmra.mxu0 %v165
    %v505 = vpop.f32.mrf.mxu0
    %v506 = vadd.f32 %v98, %v505
    %v507 = vpop.f32.mrf.mxu0
    %v508 = vadd.f32 %v98, %v507
    %509 = vmatprep.mubr.f32.mxu0 0.0
    %510 = vmatmul.mubr.f32.gmra.mxu0 %v168
    %v511 = vpop.f32.mrf.mxu0
    %v512 = vadd.f32 %v103, %v511
    %v513 = vpop.f32.mrf.mxu0
    %v514 = vadd.f32 %v103, %v513
    %515 = vmatprep.mubr.f32.mxu0 0.0
    %516 = vmatmul.mubr.f32.gmra.mxu0 %v171
    %v517 = vpop.f32.mrf.mxu0
    %v518 = vadd.f32 %v108, %v517
    %v519 = vpop.f32.mrf.mxu0
    %v520 = vadd.f32 %v108, %v519
    %521 = vmatprep.mubr.f32.mxu0 0.0
    %522 = vmatmul.mubr.f32.gmra.mxu0 %v174
    %v523 = vpop.f32.mrf.mxu0
    %v524 = vadd.f32 %v113, %v523
    %v525 = vpop.f32.mrf.mxu0
    %v526 = vadd.f32 %v113, %v525
    %527 = vmatprep.mubr.f32.mxu0 0.0
    %528 = vmatmul.mubr.f32.gmra.mxu0 %v177
    %v529 = vpop.f32.mrf.mxu0
    %v530 = vadd.f32 %v118, %v529
    %v531 = vpop.f32.mrf.mxu0
    %v532 = vadd.f32 %v118, %v531
    %533 = vmatprep.mubr.f32.mxu0 0.0
    %534 = vmatmul.mubr.f32.gmra.mxu0 %v180
    %v535 = vpop.f32.mrf.mxu0
    %v536 = vadd.f32 %v123, %v535
    %v537 = vpop.f32.mrf.mxu0
    %v538 = vadd.f32 %v123, %v537
    %539 = vmatprep.mubr.f32.mxu0 0.0
    %540 = vmatmul.mubr.f32.gmra.mxu0 %v183
    %v541 = vpop.f32.mrf.mxu0
    %v542 = vadd.f32 %v128, %v541
    %v543 = vpop.f32.mrf.mxu0
    %v544 = vadd.f32 %v128, %v543
    %545 = vmatprep.mubr.f32.mxu0 0.0
    %546 = vmatmul.mubr.f32.gmra.mxu0 %v186
    %v547 = vpop.f32.mrf.mxu0
    %v548 = vadd.f32 %v133, %v547
    %v549 = vpop.f32.mrf.mxu0
    %v550 = vadd.f32 %v133, %v549
    %551 = vmatprep.mubr.f32.mxu0 0.0
    %552 = vmatmul.mubr.f32.gmra.mxu0 %v189
    %v553 = vpop.f32.mrf.mxu0
    %v554 = vadd.f32 %v138, %v553
    %v555 = vpop.f32.mrf.mxu0
    %v556 = vadd.f32 %v138, %v555
    %557 = vdwg.mxu0
    %v558 = vmax.f32 %v464, 0.0
    %v559 = vmax.f32 %v466, 0.0
    %v560 = vmax.f32 %v470, 0.0
    %v561 = vmax.f32 %v472, 0.0
    %v562 = vmax.f32 %v476, 0.0
    %v563 = vmax.f32 %v478, 0.0
    %v564 = vmax.f32 %v482, 0.0
    %v565 = vmax.f32 %v484, 0.0
    %v566 = vmax.f32 %v488, 0.0
    %v567 = vmax.f32 %v490, 0.0
    %v568 = vmax.f32 %v494, 0.0
    %v569 = vmax.f32 %v496, 0.0
    %v570 = vmax.f32 %v500, 0.0
    %v571 = vmax.f32 %v502, 0.0
    %v572 = vmax.f32 %v506, 0.0
    %v573 = vmax.f32 %v508, 0.0
    %v574 = vmax.f32 %v512, 0.0
    %v575 = vmax.f32 %v514, 0.0
    %v576 = vmax.f32 %v518, 0.0
    %v577 = vmax.f32 %v520, 0.0
    %v578 = vmax.f32 %v524, 0.0
    %v579 = vmax.f32 %v526, 0.0
    %v580 = vmax.f32 %v530, 0.0
    %v581 = vmax.f32 %v532, 0.0
    %v582 = vmax.f32 %v536, 0.0
    %v583 = vmax.f32 %v538, 0.0
    %v584 = vmax.f32 %v542, 0.0
    %v585 = vmax.f32 %v544, 0.0
    %v586 = vmax.f32 %v548, 0.0
    %v587 = vmax.f32 %v550, 0.0
    %v588 = vmax.f32 %v554, 0.0
    %v589 = vmax.f32 %v556, 0.0
    %v590 = vlaneseq
    %v591 = vshrl.u32 %v590, 7
    %v592 = vlaneseq
    %v593 = vand.u32 %v592, 127
    %v594 = vadd.s32 %v593, 128
    %v595 = vadd.s32 %v593, 256
    %v596 = vadd.s32 %v593, 384
    %v597 = vmul.u32 %v591, 256
    %vm598 = vcmp.ge.s32.totalorder %v593, %v597
    %vm599 = vcmp.ge.s32.totalorder %v594, %v597
    %vm600 = vcmp.ge.s32.totalorder %v595, %v597
    %vm601 = vcmp.ge.s32.totalorder %v596, %v597
    %v602 = vadd.s32 %v591, 1
    %v603 = vmul.u32 %v602, 256
    %vm604 = vcmp.lt.s32.totalorder %v593, %v603
    %vm605 = vcmp.lt.s32.totalorder %v594, %v603
    %vm606 = vcmp.lt.s32.totalorder %v595, %v603
    %vm607 = vcmp.lt.s32.totalorder %v596, %v603
    %vm608 = vmand %vm598, %vm604
    %vm609 = vmand %vm599, %vm605
    %vm610 = vmand %vm600, %vm606
    %vm611 = vmand %vm601, %vm607
    %v612 = vsel %vm608, 1.0, 0.0
    %v613 = vsel %vm609, 1.0, 0.0
    %v614 = vsel %vm610, 1.0, 0.0
    %v615 = vsel %vm611, 1.0, 0.0
    %616 = vmatprep.subr.mxu0 %v388
    %617 = vmatpush1.xpose.msra.mxu0 %v387
    %618 = vmatprep.subr.mxu0 %v386
    %619 = vmatpush1.xpose.msra.mxu0 %v385
    %620 = vmatprep.subr.mxu0 %v384
    %621 = vmatpush1.xpose.msra.mxu0 %v383
    %622 = vmatprep.subr.mxu0 %v382
    %623 = vmatpush1.xpose.msra.mxu0 %v381
    %624 = vmatprep.subr.mxu0 %v380
    %625 = vmatpush1.xpose.msra.mxu0 %v379
    %626 = vmatprep.subr.mxu0 %v378
    %627 = vmatpush1.xpose.msra.mxu0 %v377
    %628 = vmatprep.subr.mxu0 %v376
    %629 = vmatpush1.xpose.msra.mxu0 %v375
    %630 = vmatprep.subr.mxu0 %v374
    %631 = vmatpush1.xpose.msra.mxu0 %v373
    %632 = vmatprep.subr.mxu0 %v372
    %633 = vmatpush1.xpose.msra.mxu0 %v371
    %634 = vmatprep.subr.mxu0 %v370
    %635 = vmatpush1.xpose.msra.mxu0 %v369
    %636 = vmatprep.subr.mxu0 %v368
    %637 = vmatpush1.xpose.msra.mxu0 %v367
    %638 = vmatprep.subr.mxu0 %v366
    %639 = vmatpush1.xpose.msra.mxu0 %v365
    %640 = vmatprep.subr.mxu0 %v364
    %641 = vmatpush1.xpose.msra.mxu0 %v363
    %642 = vmatprep.subr.mxu0 %v362
    %643 = vmatpush1.xpose.msra.mxu0 %v361
    %644 = vmatprep.subr.mxu0 %v360
    %645 = vmatpush1.xpose.msra.mxu0 %v359
    %646 = vmatprep.subr.mxu0 %v358
    %647 = vmatpush1.xpose.msra.mxu0 %v357
    %648 = vmatprep.subr.mxu0 0.0
    %649 = vmatpush2.xpose.msra.mxu0 0.0
    %650 = vmatprep.subr.mxu0 0.0
    %651 = vmatpush2.xpose.msra.mxu0 0.0
    %652 = vmatprep.subr.mxu0 0.0
    %653 = vmatpush2.xpose.msra.mxu0 0.0
    %654 = vmatprep.subr.mxu0 0.0
    %655 = vmatpush2.xpose.msra.mxu0 0.0
    %656 = vmatprep.subr.mxu0 0.0
    %657 = vmatpush2.xpose.msra.mxu0 0.0
    %658 = vmatprep.subr.mxu0 0.0
    %659 = vmatpush2.xpose.msra.mxu0 0.0
    %660 = vmatprep.subr.mxu0 0.0
    %661 = vmatpush2.xpose.msra.mxu0 0.0
    %662 = vmatprep.subr.mxu0 0.0
    %663 = vmatpush2.xpose.msra.mxu0 0.0
    %664 = vmatprep.subr.mxu0 0.0
    %665 = vmatpush2.xpose.msra.mxu0 0.0
    %666 = vmatprep.subr.mxu0 0.0
    %667 = vmatpush2.xpose.msra.mxu0 0.0
    %668 = vmatprep.subr.mxu0 0.0
    %669 = vmatpush2.xpose.msra.mxu0 0.0
    %670 = vmatprep.subr.mxu0 0.0
    %671 = vmatpush2.xpose.msra.mxu0 0.0
    %672 = vmatprep.subr.mxu0 0.0
    %673 = vmatpush2.xpose.msra.mxu0 0.0
    %674 = vmatprep.subr.mxu0 0.0
    %675 = vmatpush2.xpose.msra.mxu0 0.0
    %676 = vmatprep.subr.mxu0 0.0
    %677 = vmatpush2.xpose.msra.mxu0 0.0
    %678 = vmatprep.subr.mxu0 0.0
    %679 = vmatpush2.xpose.msra.mxu0 0.0
    %680 = vmatprep.mubr.f32.mxu0 %v613
    %681 = vmatmul.mubr.f32.gmra.mxu0 %v612
    %v682 = vpop.f32.mrf.mxu0
    %v683 = vadd.f32 0.0, %v682
    %v684 = vpop.f32.mrf.mxu0
    %685 = vdwg.mxu0
    %686 = vmatprep.subr.mxu0 %v589
    %687 = vmatpush1.xpose.msra.mxu0 %v588
    %688 = vmatprep.subr.mxu0 %v587
    %689 = vmatpush1.xpose.msra.mxu0 %v586
    %690 = vmatprep.subr.mxu0 %v585
    %691 = vmatpush1.xpose.msra.mxu0 %v584
    %692 = vmatprep.subr.mxu0 %v583
    %693 = vmatpush1.xpose.msra.mxu0 %v582
    %694 = vmatprep.subr.mxu0 %v581
    %695 = vmatpush1.xpose.msra.mxu0 %v580
    %696 = vmatprep.subr.mxu0 %v579
    %697 = vmatpush1.xpose.msra.mxu0 %v578
    %698 = vmatprep.subr.mxu0 %v577
    %699 = vmatpush1.xpose.msra.mxu0 %v576
    %700 = vmatprep.subr.mxu0 %v575
    %701 = vmatpush1.xpose.msra.mxu0 %v574
    %702 = vmatprep.subr.mxu0 %v573
    %703 = vmatpush1.xpose.msra.mxu0 %v572
    %704 = vmatprep.subr.mxu0 %v571
    %705 = vmatpush1.xpose.msra.mxu0 %v570
    %706 = vmatprep.subr.mxu0 %v569
    %707 = vmatpush1.xpose.msra.mxu0 %v568
    %708 = vmatprep.subr.mxu0 %v567
    %709 = vmatpush1.xpose.msra.mxu0 %v566
    %710 = vmatprep.subr.mxu0 %v565
    %711 = vmatpush1.xpose.msra.mxu0 %v564
    %712 = vmatprep.subr.mxu0 %v563
    %713 = vmatpush1.xpose.msra.mxu0 %v562
    %714 = vmatprep.subr.mxu0 %v561
    %715 = vmatpush1.xpose.msra.mxu0 %v560
    %716 = vmatprep.subr.mxu0 %v559
    %717 = vmatpush1.xpose.msra.mxu0 %v558
    %718 = vmatprep.subr.mxu0 0.0
    %719 = vmatpush2.xpose.msra.mxu0 0.0
    %720 = vmatprep.subr.mxu0 0.0
    %721 = vmatpush2.xpose.msra.mxu0 0.0
    %722 = vmatprep.subr.mxu0 0.0
    %723 = vmatpush2.xpose.msra.mxu0 0.0
    %724 = vmatprep.subr.mxu0 0.0
    %725 = vmatpush2.xpose.msra.mxu0 0.0
    %726 = vmatprep.subr.mxu0 0.0
    %727 = vmatpush2.xpose.msra.mxu0 0.0
    %728 = vmatprep.subr.mxu0 0.0
    %729 = vmatpush2.xpose.msra.mxu0 0.0
    %730 = vmatprep.subr.mxu0 0.0
    %731 = vmatpush2.xpose.msra.mxu0 0.0
    %732 = vmatprep.subr.mxu0 0.0
    %733 = vmatpush2.xpose.msra.mxu0 0.0
    %734 = vmatprep.subr.mxu0 0.0
    %735 = vmatpush2.xpose.msra.mxu0 0.0
    %736 = vmatprep.subr.mxu0 0.0
    %737 = vmatpush2.xpose.msra.mxu0 0.0
    %738 = vmatprep.subr.mxu0 0.0
    %739 = vmatpush2.xpose.msra.mxu0 0.0
    %740 = vmatprep.subr.mxu0 0.0
    %741 = vmatpush2.xpose.msra.mxu0 0.0
    %742 = vmatprep.subr.mxu0 0.0
    %743 = vmatpush2.xpose.msra.mxu0 0.0
    %744 = vmatprep.subr.mxu0 0.0
    %745 = vmatpush2.xpose.msra.mxu0 0.0
    %746 = vmatprep.subr.mxu0 0.0
    %747 = vmatpush2.xpose.msra.mxu0 0.0
    %748 = vmatprep.subr.mxu0 0.0
    %749 = vmatpush2.xpose.msra.mxu0 0.0
    %750 = vmatprep.mubr.f32.mxu0 %v615
    %751 = vmatmul.mubr.f32.gmra.mxu0 %v614
    %v752 = vpop.f32.mrf.mxu0
    %v753 = vadd.f32 %v683, %v752
    %v754 = vpop.f32.mrf.mxu0
    %755 = vdwg.mxu0
    %v756 = vld [vmem:[%s3] sm:$0xff]
    %v757 = vld [vmem:[%s3 + $0x8] sm:$0xff]
    %v758 = vld [vmem:[%s3 + $0x10] sm:$0xff]
    %v759 = vld [vmem:[%s3 + $0x18] sm:$0xff]
    %v760 = vld [vmem:[%s3 + $0x20] sm:$0xff]
    %v761 = vld [vmem:[%s3 + $0x28] sm:$0xff]
    %v762 = vld [vmem:[%s3 + $0x30] sm:$0xff]
    %v763 = vld [vmem:[%s3 + $0x38] sm:$0xff]
    %v764 = vld [vmem:[%s3 + $0x40] sm:$0xff]
    %v765 = vld [vmem:[%s3 + $0x48] sm:$0xff]
    %v766 = vld [vmem:[%s3 + $0x50] sm:$0xff]
    %v767 = vld [vmem:[%s3 + $0x58] sm:$0xff]
    %v768 = vld [vmem:[%s3 + $0x60] sm:$0xff]
    %v769 = vld [vmem:[%s3 + $0x68] sm:$0xff]
    %v770 = vld [vmem:[%s3 + $0x70] sm:$0xff]
    %v771 = vld [vmem:[%s3 + $0x78] sm:$0xff]
    %v772 = vld [vmem:[%s4] sm:$0x1]
    %v774 = vlaneseq
    %v775 = vshrl.u32 %v774, 7
    %v776 = vsub.s32 0, %v775
    %v777 = vrot.slane %v772, %v776
    %779 = vmatprep.subr.mxu0 0.0
    %780 = vmatpush1.msra.mxu0 %v771
    %781 = vmatprep.subr.mxu0 0.0
    %782 = vmatpush1.msra.mxu0 %v770
    %783 = vmatprep.subr.mxu0 0.0
    %784 = vmatpush1.msra.mxu0 %v769
    %785 = vmatprep.subr.mxu0 0.0
    %786 = vmatpush1.msra.mxu0 %v768
    %787 = vmatprep.subr.mxu0 0.0
    %788 = vmatpush1.msra.mxu0 %v767
    %789 = vmatprep.subr.mxu0 0.0
    %790 = vmatpush1.msra.mxu0 %v766
    %791 = vmatprep.subr.mxu0 0.0
    %792 = vmatpush1.msra.mxu0 %v765
    %793 = vmatprep.subr.mxu0 0.0
    %794 = vmatpush1.msra.mxu0 %v764
    %795 = vmatprep.subr.mxu0 0.0
    %796 = vmatpush1.msra.mxu0 %v763
    %797 = vmatprep.subr.mxu0 0.0
    %798 = vmatpush1.msra.mxu0 %v762
    %799 = vmatprep.subr.mxu0 0.0
    %800 = vmatpush1.msra.mxu0 %v761
    %801 = vmatprep.subr.mxu0 0.0
    %802 = vmatpush1.msra.mxu0 %v760
    %803 = vmatprep.subr.mxu0 0.0
    %804 = vmatpush1.msra.mxu0 %v759
    %805 = vmatprep.subr.mxu0 0.0
    %806 = vmatpush1.msra.mxu0 %v758
    %807 = vmatprep.subr.mxu0 0.0
    %808 = vmatpush1.msra.mxu0 %v757
    %809 = vmatprep.subr.mxu0 0.0
    %810 = vmatpush1.msra.mxu0 %v756
    %811 = vmatprep.subr.mxu0 0.0
    %812 = vmatpush2.msra.mxu0 0.0
    %813 = vmatprep.subr.mxu0 0.0
    %814 = vmatpush2.msra.mxu0 0.0
    %815 = vmatprep.subr.mxu0 0.0
    %816 = vmatpush2.msra.mxu0 0.0
    %817 = vmatprep.subr.mxu0 0.0
    %818 = vmatpush2.msra.mxu0 0.0
    %819 = vmatprep.subr.mxu0 0.0
    %820 = vmatpush2.msra.mxu0 0.0
    %821 = vmatprep.subr.mxu0 0.0
    %822 = vmatpush2.msra.mxu0 0.0
    %823 = vmatprep.subr.mxu0 0.0
    %824 = vmatpush2.msra.mxu0 0.0
    %825 = vmatprep.subr.mxu0 0.0
    %826 = vmatpush2.msra.mxu0 0.0
    %827 = vmatprep.subr.mxu0 0.0
    %828 = vmatpush2.msra.mxu0 0.0
    %829 = vmatprep.subr.mxu0 0.0
    %830 = vmatpush2.msra.mxu0 0.0
    %831 = vmatprep.subr.mxu0 0.0
    %832 = vmatpush2.msra.mxu0 0.0
    %833 = vmatprep.subr.mxu0 0.0
    %834 = vmatpush2.msra.mxu0 0.0
    %835 = vmatprep.subr.mxu0 0.0
    %836 = vmatpush2.msra.mxu0 0.0
    %837 = vmatprep.subr.mxu0 0.0
    %838 = vmatpush2.msra.mxu0 0.0
    %839 = vmatprep.subr.mxu0 0.0
    %840 = vmatpush2.msra.mxu0 0.0
    %841 = vmatprep.subr.mxu0 0.0
    %842 = vmatpush2.msra.mxu0 0.0
    %843 = vmatprep.mubr.f32.mxu0 0.0
    %844 = vmatmul.mubr.f32.gmra.mxu0 %v753
    %v845 = vpop.f32.mrf.mxu0
    %v846 = vadd.f32 %v777, %v845
    %v847 = vpop.f32.mrf.mxu0
    %848 = vdwg.mxu0
    %v849 = vxor.u32 %v846, 2147483648
    %v850 = vmul.f32 %v849, 1.442695
    %v851 = vpow.pop %v850
    %v852 = vadd.f32 %v851, 1.0
    %v853 = vrcp.pop %v852
    %v854 = vmul.f32 1.0, %v853
    %v855 = vld [vmem:[%s5] sm:$0xff]
    %v856 = vld [vmem:[%s5 + $0x8] sm:$0xff]
    %v857 = vld [vmem:[%s5 + $0x10] sm:$0xff]
    %v858 = vld [vmem:[%s5 + $0x18] sm:$0xff]
    %v859 = vld [vmem:[%s5 + $0x20] sm:$0xff]
    %v860 = vld [vmem:[%s5 + $0x28] sm:$0xff]
    %v861 = vld [vmem:[%s5 + $0x30] sm:$0xff]
    %v862 = vld [vmem:[%s5 + $0x38] sm:$0xff]
    %v863 = vld [vmem:[%s6] sm:$0x1]
    %v865 = vlaneseq
    %v866 = vshrl.u32 %v865, 7
    %v867 = vsub.s32 0, %v866
    %v868 = vrot.slane %v863, %v867
    %vm870 = vcmask 523264
    %v872 = vsel %vm870, %v854, 0
    %874 = vmatprep.subr.mxu0 0.0
    %875 = vmatpush1.msra.mxu0 0.0
    %876 = vmatprep.subr.mxu0 0.0
    %877 = vmatpush1.msra.mxu0 0.0
    %878 = vmatprep.subr.mxu0 0.0
    %879 = vmatpush1.msra.mxu0 0.0
    %880 = vmatprep.subr.mxu0 0.0
    %881 = vmatpush1.msra.mxu0 0.0
    %882 = vmatprep.subr.mxu0 0.0
    %883 = vmatpush1.msra.mxu0 0.0
    %884 = vmatprep.subr.mxu0 0.0
    %885 = vmatpush1.msra.mxu0 0.0
    %886 = vmatprep.subr.mxu0 0.0
    %887 = vmatpush1.msra.mxu0 0.0
    %888 = vmatprep.subr.mxu0 0.0
    %889 = vmatpush1.msra.mxu0 0.0
    %890 = vmatprep.subr.mxu0 0.0
    %891 = vmatpush1.msra.mxu0 %v862
    %892 = vmatprep.subr.mxu0 0.0
    %893 = vmatpush1.msra.mxu0 %v861
    %894 = vmatprep.subr.mxu0 0.0
    %895 = vmatpush1.msra.mxu0 %v860
    %896 = vmatprep.subr.mxu0 0.0
    %897 = vmatpush1.msra.mxu0 %v859
    %898 = vmatprep.subr.mxu0 0.0
    %899 = vmatpush1.msra.mxu0 %v858
    %900 = vmatprep.subr.mxu0 0.0
    %901 = vmatpush1.msra.mxu0 %v857
    %902 = vmatprep.subr.mxu0 0.0
    %903 = vmatpush1.msra.mxu0 %v856
    %904 = vmatprep.subr.mxu0 0.0
    %905 = vmatpush1.msra.mxu0 %v855
    %906 = vmatprep.subr.mxu0 0.0
    %907 = vmatpush2.msra.mxu0 0.0
    %908 = vmatprep.subr.mxu0 0.0
    %909 = vmatpush2.msra.mxu0 0.0
    %910 = vmatprep.subr.mxu0 0.0
    %911 = vmatpush2.msra.mxu0 0.0
    %912 = vmatprep.subr.mxu0 0.0
    %913 = vmatpush2.msra.mxu0 0.0
    %914 = vmatprep.subr.mxu0 0.0
    %915 = vmatpush2.msra.mxu0 0.0
    %916 = vmatprep.subr.mxu0 0.0
    %917 = vmatpush2.msra.mxu0 0.0
    %918 = vmatprep.subr.mxu0 0.0
    %919 = vmatpush2.msra.mxu0 0.0
    %920 = vmatprep.subr.mxu0 0.0
    %921 = vmatpush2.msra.mxu0 0.0
    %922 = vmatprep.subr.mxu0 0.0
    %923 = vmatpush2.msra.mxu0 0.0
    %924 = vmatprep.subr.mxu0 0.0
    %925 = vmatpush2.msra.mxu0 0.0
    %926 = vmatprep.subr.mxu0 0.0
    %927 = vmatpush2.msra.mxu0 0.0
    %928 = vmatprep.subr.mxu0 0.0
    %929 = vmatpush2.msra.mxu0 0.0
    %930 = vmatprep.subr.mxu0 0.0
    %931 = vmatpush2.msra.mxu0 0.0
    %932 = vmatprep.subr.mxu0 0.0
    %933 = vmatpush2.msra.mxu0 0.0
    %934 = vmatprep.subr.mxu0 0.0
    %935 = vmatpush2.msra.mxu0 0.0
    %936 = vmatprep.subr.mxu0 0.0
    %937 = vmatpush2.msra.mxu0 0.0
    %938 = vmatprep.mubr.f32.mxu0 0.0
    %939 = vmatmul.mubr.f32.gmra.mxu0 %v872
    %v940 = vpop.f32.mrf.mxu0
    %v941 = vadd.f32 %v868, %v940
    %v942 = vpop.f32.mrf.mxu0
    %943 = vdwg.mxu0
    %v944 = vxor.u32 %v941, 2147483648
    %v945 = vmul.f32 %v944, 1.442695
    %v946 = vpow.pop %v945
    %v947 = vadd.f32 %v946, 1.0
    %v948 = vrcp.pop %v947
    %v949 = vmul.f32 1.0, %v948
    %950 = vst [vmem:[#allocation2] sm:$0x3] %v949
    // Predicated region
    $region30: #{dam_sequential_forward.1} parent=1 // pred_check
      _
    $region31: #{dam_sequential_forward.1} parent=1 // pred_check_branch
      %952 = sbr.rel (0) target = $region33
    $region32: #{dam_sequential_forward.1} parent=1 // pred_region
      %s954 = ssub.s32 32, 32
      %955 = vsyncadd [#allocation3], %s954
      %s957 = sshll.u32 [#allocation2], 4
      %s958 = int_to_ptr.vmem [resolvable:$true] %s957
      %960 = dma.vmem_to_hbm [thread:$0]  %s958, 32, %s7, [#allocation3]
    $region33: #{dam_sequential_forward.1} parent=1 // pred_fallthru
      _
    // Predicated region
    $region34: #{dam_sequential_forward.1} parent=1 // pred_check
      _
    $region35: #{dam_sequential_forward.1} parent=1 // pred_check_branch
      %962 = sbr.rel (0) target = $region37
    $region36: #{dam_sequential_forward.1} parent=1 // pred_region
      %963 = dma.done [#allocation3], 32
    $region37: #{dam_sequential_forward.1} parent=1 // pred_fallthru
      _
    %964 = vsyncpa [#allocation3], 1

</llo_original>
